<compile_context>
chip_gen: v5e
topology: v5e:2x2
jax: 0.10.0
libtpu: 0.0.40
codegen_flags: <defaults>
</compile_context>

<pallas_src>
import functools

import jax
import jax.numpy as jnp
from jax.experimental import pallas as pl
from jax.experimental.pallas import tpu as pltpu


def _layernorm_kernel(x_ref, gb_ref, o_ref, *, eps, inv_dof):
    x = x_ref[...].astype(jnp.float32)                    # (tile_rows, d_model)
    mean = jnp.mean(x, axis=-1, keepdims=True)
    diff = x - mean
    # unbiased sample variance (Bessel's correction), matching torch.std default
    var = jnp.sum(diff * diff, axis=-1, keepdims=True) * inv_dof
    std = jnp.sqrt(var)
    inv = pl.reciprocal(std + eps, approx=False)          # EUP, not VALU divide
    gamma = gb_ref[0:1, :]                                # (1, d_model) f32
    beta = gb_ref[1:2, :]                                 # (1, d_model) f32
    y = gamma * (diff * inv) + beta
    o_ref[...] = y.astype(o_ref.dtype)


def _round_up(x, m):
    return (x + m - 1) // m * m


def _choose_tile_rows(n_rows, d_model, itemsize,
                      max_tile=1024, vmem_block_budget=24 << 20):
    # sublane packing granularity for the I/O dtype (f32: 8, bf16: 16, int8: 32)
    row_align = max(8, 32 // max(1, itemsize))
    # auto double-buffering: 2 input + 2 output blocks must fit the VMEM budget
    bytes_per_row = max(1, d_model * itemsize)
    cap = max(row_align, vmem_block_budget // (4 * bytes_per_row))
    tile = min(max_tile, cap, _round_up(n_rows, row_align))
    # keep at least 2 grid steps when possible so v7x can shard across its 2 TCs
    if n_rows > row_align:
        tile = min(tile, _round_up((n_rows + 1) // 2, row_align))
    tile = max(row_align, tile // row_align * row_align)
    return tile


def layer_norm(x, gamma, beta, eps=1e-6, tile_rows=None):
    orig_shape = x.shape
    d_model = orig_shape[-1]
    x2 = x.reshape(-1, d_model)
    n_rows = x2.shape[0]

    if tile_rows is None:
        tile_rows = _choose_tile_rows(n_rows, d_model, x2.dtype.itemsize)

    # ragged row counts: pad to a multiple of tile_rows, slice the result back.
    # Padded zero rows normalize to `beta` (std=0, diff=0) -- no NaN/Inf.
    n_pad = _round_up(n_rows, tile_rows)
    if n_pad != n_rows:
        x2 = jnp.pad(x2, ((0, n_pad - n_rows), (0, 0)))
    grid = (n_pad // tile_rows,)

    # Stack gamma/beta into one (2, d_model) f32 operand: one DMA stream,
    # resident across all grid steps via the constant index_map.
    gb = jnp.stack(
        [gamma.astype(jnp.float32).reshape(d_model),
         beta.astype(jnp.float32).reshape(d_model)],
        axis=0,
    )

    # d_model == 1 would be NaN in torch (0/0); clamp the dof to avoid a
    # Python ZeroDivisionError at trace time.
    inv_dof = 1.0 / max(d_model - 1, 1)

    kernel = functools.partial(_layernorm_kernel, eps=float(eps), inv_dof=inv_dof)

    out = pl.pallas_call(
        kernel,
        out_shape=jax.ShapeDtypeStruct((n_pad, d_model), x.dtype),
        grid_spec=pltpu.PrefetchScalarGridSpec(
            num_scalar_prefetch=0,
            grid=grid,
            in_specs=[
                pl.BlockSpec((tile_rows, d_model), lambda i: (i, 0)),
                pl.BlockSpec((2, d_model), lambda i: (0, 0)),
            ],
            out_specs=pl.BlockSpec((tile_rows, d_model), lambda i: (i, 0)),
        ),
        compiler_params=pltpu.CompilerParams(
            dimension_semantics=("parallel",),
            vmem_limit_bytes=40 * 1024 * 1024,
        ),
    )(x2, gb)

    if n_pad != n_rows:
        out = out[:n_rows]
    return out.reshape(orig_shape)


if __name__ == "__main__":
    key = jax.random.PRNGKey(0)
    batch, seq, d_model = 2, 8, 32

    x = jax.random.normal(key, (batch, seq, d_model), dtype=jnp.float32)

    # Parameters initialized deterministically per the module's __init__:
    # gamma = ones(d_model), beta = zeros(d_model)
    gamma = jnp.ones((d_model,), dtype=jnp.float32)
    beta = jnp.zeros((d_model,), dtype=jnp.float32)

    y = layer_norm(x, gamma, beta, eps=1e-6)
    jax.block_until_ready(y)

    # pure-JAX reference (same semantics as the PyTorch module)
    mean = jnp.mean(x, axis=-1, keepdims=True)
    std = jnp.sqrt(jnp.sum((x - mean) ** 2, axis=-1, keepdims=True) / (d_model - 1))
    ref = gamma * (x - mean) / (std + 1e-6) + beta

    assert jnp.allclose(y, ref, atol=1e-5, rtol=1e-5), "mismatch vs reference"
    print("KERNEL_OK")
</pallas_src>

<mosaic_0001>
module attributes {stable_mosaic.version = 11 : i64} {
  func.func @_layernorm_kernel(%arg0: i32, %arg1: memref<8x32xf32, #tpu.memory_space<vmem>>, %arg2: memref<2x32xf32, #tpu.memory_space<vmem>>, %arg3: memref<8x32xf32, #tpu.memory_space<vmem>>) attributes {dimension_semantics = [#tpu.dimension_semantics<parallel>], iteration_bounds = array<i64: 2>, scalar_prefetch = 0 : i64, scratch_operands = 0 : i64, tpu.core_type = #tpu.core_type<tc>, window_params = [{transform_indices = @transform_0, window_bounds = array<i64: 8, 32>}, {pipeline_mode = #tpu.pipeline_mode<synchronous>, transform_indices = @transform_1, window_bounds = array<i64: 2, 32>}, {transform_indices = @transform_2, window_bounds = array<i64: 8, 32>}]} {
    %c0 = arith.constant 0 : index
    %c0_0 = arith.constant 0 : index
    %0 = vector.load %arg1[%c0, %c0_0] : memref<8x32xf32, #tpu.memory_space<vmem>>, vector<8x32xf32>
    %cst = arith.constant dense<0.000000e+00> : vector<8xf32>
    %1 = vector.multi_reduction <add>, %0, %cst [1] : vector<8x32xf32> to vector<8xf32>
    %2 = vector.shape_cast %1 : vector<8xf32> to vector<8x1xf32>
    %cst_1 = arith.constant 3.200000e+01 : f32
    %3 = vector.broadcast %cst_1 : f32 to vector<8x1xf32>
    %4 = arith.divf %2, %3 : vector<8x1xf32>
    %5 = vector.broadcast %4 : vector<8x1xf32> to vector<8x32xf32>
    %6 = arith.subf %0, %5 : vector<8x32xf32>
    %7 = arith.mulf %6, %6 : vector<8x32xf32>
    %cst_2 = arith.constant dense<0.000000e+00> : vector<8xf32>
    %8 = vector.multi_reduction <add>, %7, %cst_2 [1] : vector<8x32xf32> to vector<8xf32>
    %9 = vector.shape_cast %8 : vector<8xf32> to vector<8x1xf32>
    %cst_3 = arith.constant 0.0322580636 : f32
    %10 = vector.broadcast %cst_3 : f32 to vector<8x1xf32>
    %11 = arith.mulf %9, %10 : vector<8x1xf32>
    %12 = math.sqrt %11 : vector<8x1xf32>
    %cst_4 = arith.constant 9.99999997E-7 : f32
    %13 = vector.broadcast %cst_4 : f32 to vector<8x1xf32>
    %14 = arith.addf %12, %13 : vector<8x1xf32>
    %15 = tpu.reciprocal %14 : vector<8x1xf32> -> vector<8x1xf32>
    %c0_5 = arith.constant 0 : index
    %c0_6 = arith.constant 0 : index
    %16 = vector.load %arg2[%c0_5, %c0_6] : memref<2x32xf32, #tpu.memory_space<vmem>>, vector<1x32xf32>
    %c1 = arith.constant 1 : index
    %c0_7 = arith.constant 0 : index
    %17 = vector.load %arg2[%c1, %c0_7] : memref<2x32xf32, #tpu.memory_space<vmem>>, vector<1x32xf32>
    %18 = vector.broadcast %15 : vector<8x1xf32> to vector<8x32xf32>
    %19 = arith.mulf %6, %18 : vector<8x32xf32>
    %20 = vector.broadcast %16 : vector<1x32xf32> to vector<8x32xf32>
    %21 = arith.mulf %20, %19 : vector<8x32xf32>
    %22 = vector.broadcast %17 : vector<1x32xf32> to vector<8x32xf32>
    %23 = arith.addf %21, %22 : vector<8x32xf32>
    %c0_8 = arith.constant 0 : index
    %c0_9 = arith.constant 0 : index
    %24 = vector.load %arg3[%c0_8, %c0_9] : memref<8x32xf32, #tpu.memory_space<vmem>>, vector<8x32xf32>
    tpu.vector_store %arg3[%c0_8, %c0_9], %23 {strides = array<i32>} : memref<8x32xf32, #tpu.memory_space<vmem>>, vector<8x32xf32>,
    return
  }
  func.func @transform_0(%arg0: i32) -> (i32, i32) {
    %c0_i32 = arith.constant 0 : i32
    %c0_i32_0 = arith.constant 0 : i32
    return %arg0, %c0_i32 : i32, i32
  }
  func.func @transform_1(%arg0: i32) -> (i32, i32) {
    %c0_i32 = arith.constant 0 : i32
    %c0_i32_0 = arith.constant 0 : i32
    %c0_i32_1 = arith.constant 0 : i32
    return %c0_i32, %c0_i32_0 : i32, i32
  }
  func.func @transform_2(%arg0: i32) -> (i32, i32) {
    %c0_i32 = arith.constant 0 : i32
    %c0_i32_0 = arith.constant 0 : i32
    return %arg0, %c0_i32 : i32, i32
  }
}

</mosaic_0001>

<llo_original>
// kernel: tpu_custom_call.1
$region0: #{tpu_custom_call.1}
  #allocation0 [shape = 'u32[]', space=smem, size = 0x4, offset = 0x4, fixed_abs, tag = 'smem constant byte address 0x4 - core index']
  #allocation1 [shape = 'u32[72,128]{1,0:T(1,128)}', space=vmem, size = 0x9000, scoped, tag = 'internal scratch']
  %s0 = inlined_call_operand.hbm [shape: f32[16,32], index: 0, kind: input, shape index: {}]
  %s1 = inlined_call_operand.hbm [shape: f32[2,32], index: 1, kind: input, shape index: {}]
  %s2 = inlined_call_operand.hbm [shape: f32[16,32], index: 2, kind: output, shape index: {}]
  %s3 = sld [smem:[#allocation0]]
  $region49: #{tpu_custom_call.1} parent=0
    _
  %s5 = ssub.s32 1, %s3
  %s6 = scalar_select 0, %s5, %s3
  $region1: #{tpu_custom_call.1} parent=0
    #allocation2 [shape = 'u8[8192]{0}', space=vmem, size = 0x2000, scoped, tag = 'input window, operand 0']
    #allocation3 [shape = 's32[2]{0}', space=sflag, size = 0x8, scoped, tag = 'scoped memory for tpu_custom_call.1']
    #allocation4 [shape = 's32[2]{0}', space=sflag, size = 0x8, scoped, tag = 'scoped memory for tpu_custom_call.1']
    #allocation5 [shape = 'u8[1024]{0}', space=vmem, size = 0x400, scoped, tag = 'input window, operand 1, single buffered']
    #allocation6 [shape = 's32[1]{0}', space=sflag, size = 0x4, scoped, tag = 'scoped memory for tpu_custom_call.1']
    #allocation7 [shape = 'u8[8192]{0}', space=vmem, size = 0x2000, scoped, tag = 'output window, operand 0']
    %7 = vsyncpa [#allocation3], 0
    %s8 = scalar_lea.sflag [#allocation3], 1
    %9 = vsyncpa %s8, 0
    %10 = vsyncpa [#allocation6], 0
    %11 = vsyncpa [#allocation4], 0
    %s12 = scalar_lea.sflag [#allocation4], 1
    %13 = vsyncpa %s12, 0
    loop: start=0, step=1, limit=4
    $region2: #{tpu_custom_call.1} parent=1 // loop_pre_header
      _
    $region3: #{tpu_custom_call.1} parent=1 // loop_header
      %s15 = sphi 0, %s19
      %p16 = scmp.ge.s32.totalorder %s15, 4
      %s25 = sphi 0, %s27
      %s28 = sphi 0, %s25
      %s29 = sphi 0, %s28
      %s45 = sphi 0, %s29
      %s49 = sphi 0, %s49
      %s51 = sphi 0, %s49
      %s52 = sphi 0, %s51
      %s66 = sphi 0, %s52
      %s72 = sphi 0, %s74
      %s75 = sphi 0, %s72
      %s76 = sphi 0, %s75
      %s92 = sphi 0, %s76
    $region4: #{tpu_custom_call.1} parent=1 // loop_header_branch
      %18 = sbr.rel (%p16) target = $region8
    $region5: #{tpu_custom_call.1} parent=1 // loop_body
      %s20 = ssub.s32 %s15, 1
      %s21 = ssub.s32 %s15, 2
      %s22 = sadd.s32 %s15, 1
      %s23 = ssub.s32 %s15, %s22
      %p24 = scmp.eq.s32.totalorder %s23, 0
      %s26 = sadd.s32 %s25, 1
      %s27 = scalar_select %p24, %s25, %s26
      %p30 = pneg %p24
      %p31 = scmp.eq.s32.totalorder %s15, 1
      %p32 = por %p30, %p31
      %p33 = scmp.ne.s32.totalorder %s25, %s28
      %p34 = scmp.eq.s32.totalorder %s15, 0
      %p35 = por %p33, %p34
      %p36 = scmp.ne.s32.totalorder %s25, %s28
      %p37 = scmp.eq.s32.totalorder %s20, 1
      %p38 = por %p36, %p37
      %p39 = scmp.ne.s32.totalorder %s28, %s29
      %p40 = scmp.eq.s32.totalorder %s20, 0
      %p41 = por %p39, %p40
      %p42 = scmp.ne.s32.totalorder %s28, %s29
      %p43 = scmp.eq.s32.totalorder %s21, 1
      %p44 = por %p42, %p43
      %p46 = scmp.ne.s32.totalorder %s29, %s45
      %p47 = scmp.eq.s32.totalorder %s21, 0
      %p48 = por %p46, %p47
      %s50 = sadd.s32 %s49, 1
      %p53 = scmp.eq.s32.totalorder %s15, 1
      %p54 = scmp.ne.s32.totalorder %s49, %s51
      %p55 = scmp.eq.s32.totalorder %s15, 0
      %p56 = por %p54, %p55
      %p57 = scmp.ne.s32.totalorder %s49, %s51
      %p58 = scmp.eq.s32.totalorder %s20, 1
      %p59 = por %p57, %p58
      %p60 = scmp.ne.s32.totalorder %s51, %s52
      %p61 = scmp.eq.s32.totalorder %s20, 0
      %p62 = por %p60, %p61
      %p63 = scmp.ne.s32.totalorder %s51, %s52
      %p64 = scmp.eq.s32.totalorder %s21, 1
      %p65 = por %p63, %p64
      %p67 = scmp.ne.s32.totalorder %s52, %s66
      %p68 = scmp.eq.s32.totalorder %s21, 0
      %p69 = por %p67, %p68
      %s70 = ssub.s32 %s15, %s22
      %p71 = scmp.eq.s32.totalorder %s70, 0
      %s73 = sadd.s32 %s72, 1
      %s74 = scalar_select %p71, %s72, %s73
      %p77 = pneg %p71
      %p78 = scmp.eq.s32.totalorder %s15, 1
      %p79 = por %p77, %p78
      %p80 = scmp.ne.s32.totalorder %s72, %s75
      %p81 = scmp.eq.s32.totalorder %s15, 0
      %p82 = por %p80, %p81
      %p83 = scmp.ne.s32.totalorder %s72, %s75
      %p84 = scmp.eq.s32.totalorder %s20, 1
      %p85 = por %p83, %p84
      %p86 = scmp.ne.s32.totalorder %s75, %s76
      %p87 = scmp.eq.s32.totalorder %s20, 0
      %p88 = por %p86, %p87
      %p89 = scmp.ne.s32.totalorder %s75, %s76
      %p90 = scmp.eq.s32.totalorder %s21, 1
      %p91 = por %p89, %p90
      %p93 = scmp.ne.s32.totalorder %s76, %s92
      %p94 = scmp.eq.s32.totalorder %s21, 0
      %p95 = por %p93, %p94
      %p96 = scmp.le.s32.totalorder 1, %s15
      %p97 = scmp.lt.s32.totalorder %s15, 3
      %p98 = pnand %p96, %p97
      %p99 = pneg %p98
      // Predicated region
      $region9: #{tpu_custom_call.1} parent=5 // pred_check
        _
      $region10: #{tpu_custom_call.1} parent=5 // pred_check_branch
        %101 = sbr.rel (%p98) target = $region12
      $region11: #{tpu_custom_call.1} parent=5 // pred_region
        %s102 = ssub.s32 %s15, 1
        // Predicated region
        $region13: #{tpu_custom_call.1} parent=11 // pred_check
          %p103 = pneg %p62
        $region14: #{tpu_custom_call.1} parent=11 // pred_check_branch
          %105 = sbr.rel (%p103) target = $region16
        $region15: #{tpu_custom_call.1} parent=11 // pred_region
          %107 = vsyncadd [#allocation6], 0
          %s109 = sshll.u32 %s1, 4
          %s110 = int_to_ptr.hbm [resolvable:$true] %s109
          %s111 = sshll.u32 [#allocation5], 4
          %s112 = int_to_ptr.vmem [resolvable:$true] %s111
          %114 = dma.hbm_to_vmem [thread:$0]  %s110, 32, %s112, [#allocation6]
        $region16: #{tpu_custom_call.1} parent=11 // pred_fallthru
          _
      $region12: #{tpu_custom_call.1} parent=5 // pred_fallthru
        _
      %p115 = scmp.lt.s32.totalorder %s15, 2
      // Predicated region
      $region17: #{tpu_custom_call.1} parent=5 // pred_check
        %p116 = pneg %p115
      $region18: #{tpu_custom_call.1} parent=5 // pred_check_branch
        %118 = sbr.rel (%p116) target = $region20
      $region19: #{tpu_custom_call.1} parent=5 // pred_region
        // Predicated region
        $region21: #{tpu_custom_call.1} parent=19 // pred_check
          %p119 = pneg %p35
        $region22: #{tpu_custom_call.1} parent=19 // pred_check_branch
          %121 = sbr.rel (%p119) target = $region24
        $region23: #{tpu_custom_call.1} parent=19 // pred_region
          %s122 = sand.u32 %s25, 1
          %s123 = scalar_lea.sflag [#allocation3], %s122
          %s124 = sand.u32 %s25, 1
          %s125 = smul.addr %s124, 8
          %s126 = scalar_lea.vmem [#allocation2], %s125
          %128 = vsyncadd %s123, 0
          %s129 = smul.addr %s15, 8
          %s130 = scalar_lea.hbm %s0, %s129
          %s132 = sshll.u32 %s130, 4
          %s133 = int_to_ptr.hbm [resolvable:$true] %s132
          %s134 = sshll.u32 %s126, 4
          %s135 = int_to_ptr.vmem [resolvable:$true] %s134
          %137 = dma.hbm_to_vmem [thread:$0]  %s133, 128, %s135, %s123
        $region24: #{tpu_custom_call.1} parent=19 // pred_fallthru
          _
      $region20: #{tpu_custom_call.1} parent=5 // pred_fallthru
        _
      %p138 = scmp.le.s32.totalorder 1, %s15
      %p139 = scmp.lt.s32.totalorder %s15, 3
      %p140 = pnand %p138, %p139
      %p141 = pneg %p140
      // Predicated region
      $region25: #{tpu_custom_call.1} parent=5 // pred_check
        _
      $region26: #{tpu_custom_call.1} parent=5 // pred_check_branch
        %143 = sbr.rel (%p140) target = $region28
      $region27: #{tpu_custom_call.1} parent=5 // pred_region
        %s144 = ssub.s32 %s15, 1
        %s145 = sand.u32 %s28, 1
        %s146 = scalar_lea.sflag [#allocation3], %s145
        %s147 = sand.u32 %s28, 1
        %s148 = smul.addr %s147, 8
        %s149 = scalar_lea.vmem [#allocation2], %s148
        // Predicated region
        $region29: #{tpu_custom_call.1} parent=27 // pred_check
          %p150 = pneg %p41
        $region30: #{tpu_custom_call.1} parent=27 // pred_check_branch
          %152 = sbr.rel (%p150) target = $region32
        $region31: #{tpu_custom_call.1} parent=27 // pred_region
          %154 = dma.done %s146, 128
        $region32: #{tpu_custom_call.1} parent=27 // pred_fallthru
          _
        // Predicated region
        $region33: #{tpu_custom_call.1} parent=27 // pred_check
          %p155 = pneg %p62
        $region34: #{tpu_custom_call.1} parent=27 // pred_check_branch
          %157 = sbr.rel (%p155) target = $region36
        $region35: #{tpu_custom_call.1} parent=27 // pred_region
          %159 = dma.done [#allocation6], 32
        $region36: #{tpu_custom_call.1} parent=27 // pred_fallthru
          _
        %s160 = sand.u32 %s28, 1
        %s161 = scalar_lea.sflag [#allocation3], %s160
        %s162 = sand.u32 %s28, 1
        %s163 = smul.addr %s162, 8
        %s164 = scalar_lea.vmem [#allocation2], %s163
        %p165 = pneg %p41
        %p166 = pneg %p38
        %p167 = pneg %p62
        %p168 = pneg %p59
        %p169 = pneg %p88
        %p170 = pneg %p85
        %s171 = sand.u32 %s75, 1
        %s172 = scalar_lea.sflag [#allocation4], %s171
        %s173 = sand.u32 %s75, 1
        %s174 = smul.addr %s173, 8
        %s175 = scalar_lea.vmem [#allocation7], %s174
        %v176 = vld [vmem:[%s149] sm:$0xff]
        %vm177 = vcmask 261120
        %v178 = vsel %vm177, %v176, 0.0
        %179 = vadd.xlane.f32.xlu0 %v178
        %v180 = vpop.xlane.xlu0 %179
        %v181 = vrcp.pop 32.0
        %v182 = vmul.f32 32.0, %v181
        %v183 = vsub.f32 1.0, %v182
        %v184 = vmul.f32 %v181, %v183
        %v185 = vadd.f32 %v181, %v184
        %vm186 = vweird.f32 %v181
        %v187 = vsel %vm186, %v181, %v185
        %v188 = vmul.f32 %v180, %v187
        %v189 = vsub.f32 %v176, %v188
        %v190 = vmul.f32 %v189, %v189
        %v191 = vsel %vm177, %v190, 0.0
        %192 = vadd.xlane.f32.xlu0 %v191
        %v193 = vpop.xlane.xlu0 %192
        %v194 = vmul.f32 %v193, 0.032258064
        %v195 = vrsqrt.pop %v194
        %v196 = vmul.f32 %v195, %v194
        %v197 = vmul.f32 %v196, %v195
        %v198 = vmul.f32 0.5, %v197
        %v199 = vsub.f32 1.5, %v198
        %v200 = vmul.f32 %v195, %v199
        %v201 = vmul.f32 %v194, %v200
        %vm202 = vcmp.eq.f32.partialorder %v194, inf
        %v203 = vsel %vm202, %v194, %v201
        %vm204 = vcmp.eq.f32.partialorder %v194, 0.0
        %v205 = vand.u32 %v194, 2147483648
        %v206 = vsel %vm204, %v205, %v203
        %v207 = vadd.f32 %v206, 1e-06
        %v208 = vrcp.pop %v207
        %v209 = vmul.f32 %v207, %v208
        %v210 = vsub.f32 1.0, %v209
        %v211 = vmul.f32 %v208, %v210
        %v212 = vadd.f32 %v208, %v211
        %vm213 = vweird.f32 %v207
        %vm214 = vweird.f32 %v208
        %vm215 = vmor %vm213, %vm214
        %v216 = vsel %vm215, %v208, %v212
        %v217 = vand.u32 2147483647, %v207
        %vm218 = vcmp.eq.f32.partialorder %v217, 8.507059e+37
        %v219 = vand.u32 %v207, 2147483648
        %v220 = vor.u32 1.1754944e-38, %v219
        %v221 = vsel %vm218, %v220, %v216
        %v222 = vld [vmem:[#allocation5] sm:$0x1]
        %v223 = vld [vmem:[#allocation5 + $0x1] sm:$0x1]
        %v224 = vmul.f32 %v189, %v221
        %v225 = vperm.slane %v222, 0
        %v226 = vmul.f32 %v225, %v224
        %v227 = vperm.slane %v223, 0
        %v228 = vadd.f32 %v226, %v227
        %229 = vst.msk [vmem:[%s175] sm:$0xff] %vm177, %v228
        %s230 = sand.u32 %s75, 1
        %s231 = scalar_lea.sflag [#allocation4], %s230
        %s232 = sand.u32 %s75, 1
        %s233 = smul.addr %s232, 8
        %s234 = scalar_lea.vmem [#allocation7], %s233
        // Predicated region
        $region37: #{tpu_custom_call.1} parent=27 // pred_check
          %p235 = pneg %p85
        $region38: #{tpu_custom_call.1} parent=27 // pred_check_branch
          %237 = sbr.rel (%p235) target = $region40
        $region39: #{tpu_custom_call.1} parent=27 // pred_region
          %239 = vsyncadd %s231, 0
          %s240 = smul.addr %s20, 8
          %s241 = scalar_lea.hbm %s2, %s240
          %s243 = sshll.u32 %s234, 4
          %s244 = int_to_ptr.vmem [resolvable:$true] %s243
          %s245 = sshll.u32 %s241, 4
          %s246 = int_to_ptr.hbm [resolvable:$true] %s245
          %248 = dma.vmem_to_hbm [thread:$0]  %s244, 128, %s246, %s231
        $region40: #{tpu_custom_call.1} parent=27 // pred_fallthru
          _
      $region28: #{tpu_custom_call.1} parent=5 // pred_fallthru
        _
      %p249 = scmp.le.s32.totalorder 2, %s15
      // Predicated region
      $region41: #{tpu_custom_call.1} parent=5 // pred_check
        %p250 = pneg %p249
      $region42: #{tpu_custom_call.1} parent=5 // pred_check_branch
        %252 = sbr.rel (%p250) target = $region44
      $region43: #{tpu_custom_call.1} parent=5 // pred_region
        %s253 = ssub.s32 %s15, 2
        // Predicated region
        $region45: #{tpu_custom_call.1} parent=43 // pred_check
          %p254 = pneg %p91
        $region46: #{tpu_custom_call.1} parent=43 // pred_check_branch
          %256 = sbr.rel (%p254) target = $region48
        $region47: #{tpu_custom_call.1} parent=43 // pred_region
          %s257 = sand.u32 %s76, 1
          %s258 = scalar_lea.sflag [#allocation4], %s257
          %s259 = sand.u32 %s76, 1
          %s260 = smul.addr %s259, 8
          %s261 = scalar_lea.vmem [#allocation7], %s260
          %263 = dma.done %s258, 128
        $region48: #{tpu_custom_call.1} parent=43 // pred_fallthru
          _
      $region44: #{tpu_custom_call.1} parent=5 // pred_fallthru
        _
    $region6: #{tpu_custom_call.1} parent=1 // loop_footer
      %s19 = sadd.s32 1, %s15
    $region7: #{tpu_custom_call.1} parent=1 // loop_footer_branch
      %14 = sbr.rel target = $region3
    $region8: #{tpu_custom_call.1} parent=1 // loop_exit
      _
    %264 = vsyncpa [#allocation3], 1
    %s265 = scalar_lea.sflag [#allocation3], 1
    %266 = vsyncpa %s265, 1
    %267 = vsyncpa [#allocation6], 1
    %268 = vsyncpa [#allocation4], 1
    %s269 = scalar_lea.sflag [#allocation4], 1
    %270 = vsyncpa %s269, 1

</llo_original>
